<compile_context>
chip_gen: v5e
topology: v5e:2x2
jax: 0.10.0
libtpu: 0.0.40
codegen_flags: <defaults>
</compile_context>

<pallas_src>
import jax
import jax.numpy as jnp
from jax.experimental import pallas as pl
from jax.experimental.pallas import tpu as pltpu


# ---------------------------------------------------------------------------
# VMEM budgeting helpers
# ---------------------------------------------------------------------------

def _vmem_capacity_bytes():
    """Per-core VMEM capacity; falls back to the smallest (v7x, 64 MiB/TC)."""
    try:
        info = pltpu.get_tpu_info()
        cap = getattr(info, "vmem_capacity_bytes", None)
        if cap:
            return int(cap)
    except Exception:
        pass
    return 64 * 1024 * 1024


def _default_block_bytes(cap):
    # Per grid step the working set is roughly:
    #   2 inputs x 2 pipeline buffers x block           (4 blocks, input dtype)
    #   dy / dyhat / f32 term / mask temporaries        (~4-5 blocks, <= f32)
    # i.e. ~9 block-sized buffers.  Target ~55% of VMEM for that working set:
    #   v7x (64 MiB/TC)   -> ~3.9 MiB per input block
    #   v5e/v6e (128 MiB) -> ~7.8 MiB per input block
    return max(1 << 20, int(cap * 0.55) // 9)


def _vmem_limit_bytes(block_elems, itemsize, cap):
    in_bytes = block_elems * itemsize      # one input block (input dtype)
    tmp_bytes = block_elems * 4            # one f32-sized temporary block
    # 2 inputs x 2 pipeline buffers + ~6 elementwise temporaries + slack.
    limit = 4 * in_bytes + 6 * tmp_bytes + (2 << 20)
    return int(min(max(limit, 32 << 20), cap))


# ---------------------------------------------------------------------------
# Path A: flattened (N, H*W) streaming kernel
# ---------------------------------------------------------------------------

def _make_flat_kernel(n_rows, tb, w, hw):
    dw = hw - w                      # == (H - 1) * W
    need_row_mask = (n_rows % tb) != 0

    def kernel(yhat_ref, y_ref, out_ref):
        # yhat_ref, y_ref: (tb, H*W) VMEM blocks; out_ref: (1, 1) SMEM scalar.
        y = y_ref[...]
        yh = yhat_ref[...]

        # Vertical finite difference: row h+1 of the image lives exactly W
        # lanes to the right in the flattened row.  Arithmetic stays in the
        # input dtype (bf16-native on v6e/v7x); accumulation is f32.
        dy = jnp.abs(y[:, w:] - y[:, :dw])
        dyh = jnp.abs(yh[:, w:] - yh[:, :dw])
        term = jnp.abs(dy - dyh).astype(jnp.float32)
        # TODO(synk): if a bundle dump shows materialized shifted-slice copies
        # when W % 128 != 0, move the shift to pltpu.roll(..., -w, axis=-1) so
        # it rides the otherwise-idle XLU slot.

        if need_row_mask:
            i = pl.program_id(0)
            is_last = i == pl.num_programs(0) - 1

            @pl.when(is_last)
            def _():
                # Only the final (partial) block pays for the row mask.
                n_valid = n_rows - i * tb
                row_ids = jax.lax.broadcasted_iota(jnp.int32, term.shape, 0)
                out_ref[0, 0] = jnp.sum(jnp.where(row_ids < n_valid, term, 0.0))

            @pl.when(jnp.logical_not(is_last))
            def _():
                out_ref[0, 0] = jnp.sum(term)
        else:
            out_ref[0, 0] = jnp.sum(term)

    return kernel


def _tv_loss_flat(yhat2, y2, n, hw, h, w, tb, cap):
    grid = (pl.cdiv(n, tb),)
    itemsize = max(jnp.dtype(y2.dtype).itemsize, jnp.dtype(yhat2.dtype).itemsize)
    kernel = _make_flat_kernel(n, tb, w, hw)
    partials = pl.pallas_call(
        kernel,
        out_shape=jax.ShapeDtypeStruct((grid[0], 1), jnp.float32),
        grid=grid,
        in_specs=[
            pl.BlockSpec((tb, hw), lambda i: (i, 0)),
            pl.BlockSpec((tb, hw), lambda i: (i, 0)),
        ],
        out_specs=pl.BlockSpec((1, 1), lambda i: (i, 0), memory_space=pltpu.SMEM),
        compiler_params=pltpu.CompilerParams(
            # Independent blocks: on v7x the two TensorCores split this axis.
            dimension_semantics=("parallel",),
            vmem_limit_bytes=_vmem_limit_bytes(tb * hw, itemsize, cap),
        ),
    )(yhat2, y2)
    # Final tiny reduction + normalization in f32 JAX glue.
    return jnp.sum(partials) / jnp.float32(h)


# ---------------------------------------------------------------------------
# Path B: (N, H, W) H-tiled kernel with a carried boundary row (no halo)
# ---------------------------------------------------------------------------

def _make_htiled_kernel(h, th, w):
    n_hb = -(-h // th)
    need_row_mask = (h % th) != 0

    def kernel(yhat_ref, y_ref, out_ref, acc_ref, cy_ref, cyh_ref):
        # yhat_ref/y_ref: (1, th, W) VMEM; out_ref: (1,1) SMEM (per image);
        # acc_ref: (1,1) VMEM f32 accumulator; cy/cyh: (1, W) carried rows.
        hb = pl.program_id(1)
        y = y_ref[0]       # (th, W)
        yh = yhat_ref[0]   # (th, W)

        # Within-block vertical differences.
        dy = jnp.abs(y[1:, :] - y[:-1, :])
        dyh = jnp.abs(yh[1:, :] - yh[:-1, :])
        term = jnp.abs(dy - dyh).astype(jnp.float32)    # (th-1, W)

        @pl.when(hb == 0)
        def _():
            acc_ref[...] = jnp.zeros_like(acc_ref)

        @pl.when(hb > 0)
        def _():
            # Cross-block difference against the carried previous row.
            b_dy = jnp.abs(y[0:1, :] - cy_ref[...])
            b_dyh = jnp.abs(yh[0:1, :] - cyh_ref[...])
            acc_ref[...] += jnp.sum(jnp.abs(b_dy - b_dyh).astype(jnp.float32))

        if need_row_mask:
            is_last = hb == n_hb - 1

            @pl.when(is_last)
            def _():
                n_valid = (h - 1) - hb * th
                row_ids = jax.lax.broadcasted_iota(jnp.int32, term.shape, 0)
                acc_ref[...] += jnp.sum(jnp.where(row_ids < n_valid, term, 0.0))

            @pl.when(jnp.logical_not(is_last))
            def _():
                acc_ref[...] += jnp.sum(term)
        else:
            acc_ref[...] += jnp.sum(term)

        # Carry this block's last row for the next H-block of the same image.
        cy_ref[...] = y[th - 1:th, :]
        cyh_ref[...] = yh[th - 1:th, :]

        @pl.when(hb == n_hb - 1)
        def _():
            out_ref[0, 0] = acc_ref[0, 0]

    return kernel


def _tv_loss_htiled(yhat3, y3, n, h, w, th, cap):
    n_hb = pl.cdiv(h, th)
    itemsize = max(jnp.dtype(y3.dtype).itemsize, jnp.dtype(yhat3.dtype).itemsize)
    kernel = _make_htiled_kernel(h, th, w)
    partials = pl.pallas_call(
        kernel,
        out_shape=jax.ShapeDtypeStruct((n, 1), jnp.float32),
        grid=(n, n_hb),
        in_specs=[
            pl.BlockSpec((1, th, w), lambda i, j: (i, j, 0)),
            pl.BlockSpec((1, th, w), lambda i, j: (i, j, 0)),
        ],
        out_specs=pl.BlockSpec((1, 1), lambda i, j: (i, 0), memory_space=pltpu.SMEM),
        scratch_shapes=[
            pltpu.VMEM((1, 1), jnp.float32),     # per-image accumulator
            pltpu.VMEM((1, w), y3.dtype),        # carried last row of y
            pltpu.VMEM((1, w), yhat3.dtype),     # carried last row of yhat
        ],
        compiler_params=pltpu.CompilerParams(
            # Images are independent ("parallel"); the H axis carries state
            # (accumulator + previous row) so it must stay sequential.
            dimension_semantics=("parallel", "arbitrary"),
            vmem_limit_bytes=_vmem_limit_bytes(th * w, itemsize, cap),
        ),
    )(yhat3, y3)
    return jnp.sum(partials) / jnp.float32(h)


# ---------------------------------------------------------------------------
# Public wrapper
# ---------------------------------------------------------------------------

def tv_loss(yhat, y, *, target_block_bytes=None):
    """Pallas TPU implementation of TVLoss.forward(yhat, y). Inputs are NCHW."""
    assert yhat.shape == y.shape, (yhat.shape, y.shape)
    B, C, H, W = y.shape
    if H < 2:
        # Degenerate case: no vertical differences.
        return jnp.float32(0.0)

    N = B * C
    HW = H * W
    itemsize = max(jnp.dtype(y.dtype).itemsize, jnp.dtype(yhat.dtype).itemsize)

    cap = _vmem_capacity_bytes()
    if target_block_bytes is None:
        target_block_bytes = _default_block_bytes(cap)

    row_bytes = HW * itemsize
    min_tb = N if N < 8 else 8     # smallest legal sublane block for path A

    if min_tb * row_bytes <= target_block_bytes:
        # Path A: flattened, lane-dense streaming kernel.
        tb = min(N, max(1, target_block_bytes // row_bytes))
        if tb < N:
            tb = min(N, max(8, (tb // 8) * 8))
        y2 = y.reshape(N, HW)
        yh2 = yhat.reshape(N, HW)
        return _tv_loss_flat(yh2, y2, N, HW, H, W, tb, cap)

    # Path B: a single flattened row is too big for the block budget —
    # tile H with a carried boundary row instead of forcing 8-row blocks.
    th = max(1, target_block_bytes // (W * itemsize))
    if th >= H:
        th = H
    else:
        th = min(H, max(8, (th // 8) * 8))
    y3 = y.reshape(N, H, W)
    yh3 = yhat.reshape(N, H, W)
    return _tv_loss_htiled(yh3, y3, N, H, W, th, cap)


def _tv_loss_ref(yhat, y):
    """Pure-JAX reference matching the PyTorch module exactly."""
    _, _, height, _ = y.shape
    dy = jnp.abs(y[:, :, 1:, :] - y[:, :, :-1, :])
    dyhat = jnp.abs(yhat[:, :, 1:, :] - yhat[:, :, :-1, :])
    error = jnp.sum(jnp.abs(dy - dyhat))  # torch.norm(., 1) == L1 over all elems
    return error / height


if __name__ == "__main__":
    key = jax.random.PRNGKey(0)
    k1, k2, k3, k4 = jax.random.split(key, 4)

    # Primary small test (default chip-aware tiling, flattened path).
    B, C, H, W = 2, 4, 16, 16
    yhat = jax.random.normal(k1, (B, C, H, W), dtype=jnp.float32)
    y = jax.random.normal(k2, (B, C, H, W), dtype=jnp.float32)
    out = jax.jit(tv_loss)(yhat, y)
    jax.block_until_ready(out)
    ref = _tv_loss_ref(yhat, y)
    assert jnp.allclose(out, ref, rtol=1e-5, atol=1e-5), (out, ref)

    # Exercise the partial-last-block mask in the flattened path (N % tb != 0).
    yh_b = jax.random.normal(k3, (3, 4, 16, 16), dtype=jnp.float32)
    y_b = jax.random.normal(k4, (3, 4, 16, 16), dtype=jnp.float32)
    out_b = tv_loss(yh_b, y_b, target_block_bytes=8 * 16 * 16 * 4)
    ref_b = _tv_loss_ref(yh_b, y_b)
    assert jnp.allclose(out_b, ref_b, rtol=1e-5, atol=1e-5), (out_b, ref_b)

    # Exercise the H-tiled fallback path (carried row + partial last H-block).
    yh_c = jax.random.normal(k1, (1, 2, 20, 16), dtype=jnp.float32)
    y_c = jax.random.normal(k2, (1, 2, 20, 16), dtype=jnp.float32)
    out_c = tv_loss(yh_c, y_c, target_block_bytes=8 * 16 * 4)
    ref_c = _tv_loss_ref(yh_c, y_c)
    assert jnp.allclose(out_c, ref_c, rtol=1e-5, atol=1e-5), (out_c, ref_c)

    # bf16 inputs: arithmetic in bf16 (VPU-native on v6e/v7x), accumulation f32.
    yh_d = yhat.astype(jnp.bfloat16)
    y_d = y.astype(jnp.bfloat16)
    out_d = tv_loss(yh_d, y_d)
    ref_d = _tv_loss_ref(yh_d.astype(jnp.float32), y_d.astype(jnp.float32))
    assert jnp.allclose(out_d, ref_d, rtol=5e-2, atol=5e-2), (out_d, ref_d)

    jax.block_until_ready((out, out_b, out_c, out_d))
    print("KERNEL_OK")
</pallas_src>

<mosaic_0001>
module attributes {stable_mosaic.version = 11 : i64} {
  func.func @kernel(%arg0: i32, %arg1: memref<8x256xf32, #tpu.memory_space<vmem>>, %arg2: memref<8x256xf32, #tpu.memory_space<vmem>>, %arg3: memref<1x1xf32, #tpu.memory_space<smem>>) attributes {dimension_semantics = [#tpu.dimension_semantics<parallel>], iteration_bounds = array<i64: 1>, scalar_prefetch = 0 : i64, scratch_operands = 0 : i64, tpu.core_type = #tpu.core_type<tc>, window_params = [{transform_indices = @transform_0, window_bounds = array<i64: 8, 256>}, {transform_indices = @transform_1, window_bounds = array<i64: 8, 256>}, {transform_indices = @transform_2, window_bounds = array<i64: 1, 1>}]} {
    %c0 = arith.constant 0 : index
    %c0_0 = arith.constant 0 : index
    %0 = vector.load %arg2[%c0, %c0_0] : memref<8x256xf32, #tpu.memory_space<vmem>>, vector<8x256xf32>
    %c0_1 = arith.constant 0 : index
    %c0_2 = arith.constant 0 : index
    %1 = vector.load %arg1[%c0_1, %c0_2] : memref<8x256xf32, #tpu.memory_space<vmem>>, vector<8x256xf32>
    %2 = vector.extract_strided_slice %0 {offsets = [0, 16], sizes = [8, 240], strides = [1, 1]} : vector<8x256xf32> to vector<8x240xf32>
    %3 = vector.extract_strided_slice %0 {offsets = [0, 0], sizes = [8, 240], strides = [1, 1]} : vector<8x256xf32> to vector<8x240xf32>
    %4 = arith.subf %2, %3 : vector<8x240xf32>
    %5 = math.absf %4 : vector<8x240xf32>
    %6 = vector.extract_strided_slice %1 {offsets = [0, 16], sizes = [8, 240], strides = [1, 1]} : vector<8x256xf32> to vector<8x240xf32>
    %7 = vector.extract_strided_slice %1 {offsets = [0, 0], sizes = [8, 240], strides = [1, 1]} : vector<8x256xf32> to vector<8x240xf32>
    %8 = arith.subf %6, %7 : vector<8x240xf32>
    %9 = math.absf %8 : vector<8x240xf32>
    %10 = arith.subf %5, %9 : vector<8x240xf32>
    %11 = math.absf %10 : vector<8x240xf32>
    %12 = vector.shape_cast %11 : vector<8x240xf32> to vector<1x8x240xf32>
    %cst = arith.constant dense<0.000000e+00> : vector<1xf32>
    %13 = vector.multi_reduction <add>, %12, %cst [1, 2] : vector<1x8x240xf32> to vector<1xf32>
    %14 = vector.shape_cast %13 : vector<1xf32> to vector<1x1x1xf32>
    %15 = vector.extract %14[0, 0, 0] : f32 from vector<1x1x1xf32>
    %c0_3 = arith.constant 0 : index
    %c0_4 = arith.constant 0 : index
    %16 = memref.load %arg3[%c0_3, %c0_4] : memref<1x1xf32, #tpu.memory_space<smem>>
    memref.store %15, %arg3[%c0_3, %c0_4] : memref<1x1xf32, #tpu.memory_space<smem>>
    return
  }
  func.func @transform_0(%arg0: i32) -> (i32, i32) {
    %c0_i32 = arith.constant 0 : i32
    %c0_i32_0 = arith.constant 0 : i32
    return %arg0, %c0_i32 : i32, i32
  }
  func.func @transform_1(%arg0: i32) -> (i32, i32) {
    %c0_i32 = arith.constant 0 : i32
    %c0_i32_0 = arith.constant 0 : i32
    return %arg0, %c0_i32 : i32, i32
  }
  func.func @transform_2(%arg0: i32) -> (i32, i32) {
    %c0_i32 = arith.constant 0 : i32
    %c0_i32_0 = arith.constant 0 : i32
    return %arg0, %c0_i32 : i32, i32
  }
}

</mosaic_0001>

<llo_original>
// kernel: tv_loss.1
$region0: #{tv_loss.1}
  #allocation0 [shape = 'u32[]', space=smem, size = 0x4, offset = 0x4, fixed_abs, tag = 'smem constant byte address 0x4 - core index']
  #allocation1 [shape = 'u32[72,128]{1,0:T(1,128)}', space=vmem, size = 0x9000, scoped, tag = 'internal scratch']
  %s0 = inlined_call_operand.vmem [shape: f32[8,256], index: 0, kind: input, shape index: {}]
  %s1 = inlined_call_operand.vmem [shape: f32[8,256], index: 1, kind: input, shape index: {}]
  %s2 = inlined_call_operand.hbm [shape: f32[1,1], index: 2, kind: output, shape index: {}]
  %s3 = sld [smem:[#allocation0]]
  $region18: #{tv_loss.1} parent=0
    _
  %s5 = ssub.s32 1, %s3
  %s6 = scalar_select 0, %s5, %s3
  $region1: #{tv_loss.1} parent=0
    #allocation2 [shape = 'u8[512]{0}', space=smem, size = 0x200, scoped, tag = 'output window, operand 0, single buffered']
    #allocation3 [shape = 's32[1]{0}', space=sflag, size = 0x4, scoped, tag = 'scoped memory for tv_loss.1']
    %7 = vsyncpa [#allocation3], 0
    // Predicated region
    $region2: #{tv_loss.1} parent=1 // pred_check
      _
    $region3: #{tv_loss.1} parent=1 // pred_check_branch
      %9 = sbr.rel (0) target = $region5
    $region4: #{tv_loss.1} parent=1 // pred_region
      _
    $region5: #{tv_loss.1} parent=1 // pred_fallthru
      _
    // Predicated region
    $region6: #{tv_loss.1} parent=1 // pred_check
      _
    $region7: #{tv_loss.1} parent=1 // pred_check_branch
      %11 = sbr.rel (0) target = $region9
    $region8: #{tv_loss.1} parent=1 // pred_region
      _
    $region9: #{tv_loss.1} parent=1 // pred_fallthru
      _
    %v12 = vld [vmem:[%s1] sm:$0xff]
    %v13 = vld [vmem:[%s1 + $0x8] sm:$0xff]
    %v14 = vld [vmem:[%s0] sm:$0xff]
    %v15 = vld [vmem:[%s0 + $0x8] sm:$0xff]
    %18 = vrot.lane.b32.xlu0 %v12, 16
    %v19 = vpop.permute.xlu0 %18
    %20 = vrot.lane.b32.xlu0 %v13, 16
    %v21 = vpop.permute.xlu0 %20
    %vm22 = vcmask 130048
    %v23 = vsel %vm22, %v19, %v21
    %v26 = vsub.f32 %v12, %v19
    %v27 = vsub.f32 %v13, %v23
    %v28 = vand.u32 2147483647, %v26
    %v29 = vand.u32 2147483647, %v27
    %32 = vrot.lane.b32.xlu0 %v14, 16
    %v33 = vpop.permute.xlu0 %32
    %34 = vrot.lane.b32.xlu0 %v15, 16
    %v35 = vpop.permute.xlu0 %34
    %v36 = vsel %vm22, %v33, %v35
    %v39 = vsub.f32 %v14, %v33
    %v40 = vsub.f32 %v15, %v36
    %v41 = vand.u32 2147483647, %v39
    %v42 = vand.u32 2147483647, %v40
    %v43 = vsub.f32 %v28, %v41
    %v44 = vsub.f32 %v29, %v42
    %v45 = vand.u32 2147483647, %v43
    %v46 = vand.u32 2147483647, %v44
    %49 = vrot.lane.b32.xlu0 %v45, 112
    %v50 = vpop.permute.xlu0 %49
    %51 = vrot.lane.b32.xlu0 %v46, 112
    %v52 = vpop.permute.xlu0 %51
    %vm53 = vcmask 916480
    %v54 = vsel %vm53, %v50, %v52
    %v57 = vsel %vm53, %v52, 0.0
    %v58 = vadd.f32 %v54, %v57
    %59 = vadd.xlane.f32.xlu0 %v58
    %v60 = vpop.xlane.xlu0 %59
    %v61 = vrot.slane %v60, 4
    %v62 = vadd.f32 %v60, %v61
    %v63 = vrot.slane %v62, 2
    %v64 = vadd.f32 %v62, %v63
    %v65 = vrot.slane %v64, 1
    %v66 = vadd.f32 %v64, %v65
    %s67 = vtos %v66
    %s68 = scalar_lea.smem [#allocation2], 0
    %69 = sst [smem:[%s68]] %s67
    // Predicated region
    $region10: #{tv_loss.1} parent=1 // pred_check
      _
    $region11: #{tv_loss.1} parent=1 // pred_check_branch
      %71 = sbr.rel (0) target = $region13
    $region12: #{tv_loss.1} parent=1 // pred_region
      %73 = vsyncadd [#allocation3], 0
      %s75 = sshll.u32 %s2, 4
      %s76 = int_to_ptr.hbm [resolvable:$true] %s75
      %78 = dma.smem_to_hbm [#allocation2], 16, %s76, [#allocation3]
    $region13: #{tv_loss.1} parent=1 // pred_fallthru
      _
    // Predicated region
    $region14: #{tv_loss.1} parent=1 // pred_check
      _
    $region15: #{tv_loss.1} parent=1 // pred_check_branch
      %80 = sbr.rel (0) target = $region17
    $region16: #{tv_loss.1} parent=1 // pred_region
      %82 = dma.done [#allocation3], 16
    $region17: #{tv_loss.1} parent=1 // pred_fallthru
      _
    %83 = sfence
    %84 = vsyncpa [#allocation3], 1

</llo_original>
